<compile_context>
chip_gen: v6e
topology: v6e:2x2x1
jax: 0.10.0
libtpu: 0.0.40
codegen_flags: <defaults>
</compile_context>

<pallas_src>
import jax
import jax.numpy as jnp
from jax.experimental import pallas as pl
from jax.experimental.pallas import tpu as pltpu

HIDDEN = 64          # logical hidden width (matches the PyTorch module)
HIDDEN_PAD = 128     # two packed 64-lane halves = one full vreg / MXU lane width
_ROW_ALIGN = 64      # packed-row tile alignment (= 128 batch elements)


def value_net_kernel(x_ref, w1_ref, b1_ref, w2_ref, b2_ref, w3_ref, b3_ref, out_ref):
    # One (rows, 2*D) tile; each row holds two batch elements side by side.
    # Cast to the matmul compute dtype in-kernel (hidden under the MXU).
    x = x_ref[...].astype(w1_ref.dtype)

    # fc1 + ReLU for both packed elements at once (block-diagonal W1, f32 acc).
    h1 = jnp.dot(x, w1_ref[...], preferred_element_type=jnp.float32) + b1_ref[...]
    h1 = jnp.maximum(h1, 0.0)

    # fc2 + ReLU (block-diagonal W2; activations re-cast to the compute dtype).
    h2 = jnp.dot(h1.astype(w2_ref.dtype), w2_ref[...],
                 preferred_element_type=jnp.float32) + b2_ref[...]
    h2 = jnp.maximum(h2, 0.0)

    # fc3: per-row dot with the duplicated w3 row, split into the two 64-lane
    # halves (VPU multiply + XLU lane reductions; keeps the MXU free).  b3 is a
    # scalar read from SMEM.
    prod = h2 * w3_ref[...]                                    # (rows, 128) f32
    total = jnp.sum(prod, axis=-1, keepdims=True)              # v(2i) + v(2i+1)
    lane = jax.lax.broadcasted_iota(jnp.int32, prod.shape, 1)
    left = jnp.sum(jnp.where(lane < HIDDEN, prod, 0.0), axis=-1, keepdims=True)
    b3 = b3_ref[0, 0]
    out_ref[:, 0:1] = (left + b3).astype(out_ref.dtype)           # value of elem 2i
    out_ref[:, 1:2] = (total - left + b3).astype(out_ref.dtype)   # value of elem 2i+1


def prepare_params(params, compute_dtype=jnp.bfloat16):
    """Build the packed block-diagonal weights the kernel consumes.

    Call ONCE per parameter update (hoisted out of the per-step forward).
    Weights are stored (in_features, out_features); matmul weights are cast to
    `compute_dtype`, biases / w3 / b3 stay f32 (VPU path)."""
    w1, b1, w2, b2, w3, b3 = params
    d, h = w1.shape
    assert h == HIDDEN and w2.shape == (HIDDEN, HIDDEN) and w3.shape[0] == HIDDEN
    hp = HIDDEN_PAD

    w1_bd = jnp.zeros((2 * d, hp), jnp.float32)
    w1_bd = w1_bd.at[:d, :h].set(w1).at[d:, h:].set(w1)          # blockdiag(w1, w1)
    w2_bd = jnp.zeros((hp, hp), jnp.float32)
    w2_bd = w2_bd.at[:h, :h].set(w2).at[h:, h:].set(w2)          # blockdiag(w2, w2)

    b1_d = jnp.tile(jnp.reshape(b1, (1, h)).astype(jnp.float32), (1, 2))   # (1, 128)
    b2_d = jnp.tile(jnp.reshape(b2, (1, h)).astype(jnp.float32), (1, 2))   # (1, 128)
    w3_d = jnp.tile(jnp.reshape(w3, (1, h)).astype(jnp.float32), (1, 2))   # (1, 128)
    b3_s = jnp.reshape(b3, (1, 1)).astype(jnp.float32)                     # SMEM scalar

    return (w1_bd.astype(compute_dtype), b1_d,
            w2_bd.astype(compute_dtype), b2_d, w3_d, b3_s)


def _choose_row_tile(num_rows, block_b):
    """Packed-row tile size: a multiple of _ROW_ALIGN (or the full row count),
    capped so the grid has >= 2 steps when the batch is big enough (v7x TCs)."""
    target = max(1, int(block_b) // 2)          # block_b counts batch elements
    if num_rows >= 2 * _ROW_ALIGN:
        target = min(target, pl.cdiv(num_rows, 2))
    if target >= num_rows:
        return num_rows
    tile = max(_ROW_ALIGN, (target // _ROW_ALIGN) * _ROW_ALIGN)
    return min(tile, num_rows)


def value_network_forward(x, prepared_params, *, block_b=8192):
    """x: (B, input_dim) float32 -> (B, 1) float32.

    `prepared_params` comes from prepare_params() (once per parameter update).
    block_b is the batch tile size in batch elements; large tiles amortize the
    ~0.35us/step grid overhead and are auto-aligned to 128-element multiples."""
    w1_bd, b1_d, w2_bd, b2_d, w3_d, b3_s = prepared_params
    B, D = x.shape
    assert w1_bd.shape[0] == 2 * D, "prepared params do not match input_dim"

    # Pad the batch to an even size so two elements pack per row.
    Bp = B + (B % 2)
    if Bp != B:
        x = jnp.pad(x, ((0, Bp - B), (0, 0)))
    rows = Bp // 2
    xp = x.reshape(rows, 2 * D)                 # row-major pack: free, no copy

    tile = _choose_row_tile(rows, block_b)
    grid = (pl.cdiv(rows, tile),)

    # Advisory cost + an explicit scoped-VMEM budget (v5e's default is 16 MiB).
    flops = 2 * Bp * HIDDEN * (D + HIDDEN + 1)
    bytes_accessed = int(
        xp.size * xp.dtype.itemsize + Bp * 4
        + sum(int(a.size) * a.dtype.itemsize for a in prepared_params))
    vmem_est = (
        2 * tile * (2 * D) * 4                        # x tile, double-buffered (f32)
        + 2 * tile * 2 * 4                            # output tile, double-buffered
        + 6 * tile * HIDDEN_PAD * 4                   # in-kernel f32/bf16 temporaries
        + 2 * (2 * D + HIDDEN_PAD + 3) * HIDDEN_PAD * 4)   # resident weights
    vmem_limit = int(min(max(vmem_est + (2 << 20), 16 << 20), 48 << 20))

    out2 = pl.pallas_call(
        value_net_kernel,
        out_shape=jax.ShapeDtypeStruct((rows, 2), jnp.float32),
        grid=grid,
        in_specs=[
            pl.BlockSpec((tile, 2 * D), lambda i: (i, 0)),              # packed x
            pl.BlockSpec((2 * D, HIDDEN_PAD), lambda i: (0, 0)),        # W1 blockdiag
            pl.BlockSpec((1, HIDDEN_PAD), lambda i: (0, 0)),            # b1 (dup)
            pl.BlockSpec((HIDDEN_PAD, HIDDEN_PAD), lambda i: (0, 0)),   # W2 blockdiag
            pl.BlockSpec((1, HIDDEN_PAD), lambda i: (0, 0)),            # b2 (dup)
            pl.BlockSpec((1, HIDDEN_PAD), lambda i: (0, 0)),            # w3 (dup, f32)
            pl.BlockSpec(memory_space=pltpu.MemorySpace.SMEM),          # b3 scalar
        ],
        out_specs=pl.BlockSpec((tile, 2), lambda i: (i, 0)),
        compiler_params=pltpu.CompilerParams(
            dimension_semantics=("parallel",),        # split rows across v7x TCs
            vmem_limit_bytes=vmem_limit),
        cost_estimate=pl.CostEstimate(
            flops=int(flops), transcendentals=0, bytes_accessed=bytes_accessed),
    )(xp, w1_bd, b1_d, w2_bd, b2_d, w3_d, b3_s)

    # (rows, 2) row-major == (Bp, 1); drop padding row if the batch was odd.
    return out2.reshape(Bp, 1)[:B]


def init_params(key, input_dim, hidden=HIDDEN):
    """PyTorch nn.Linear-style init (U[-1/sqrt(fan_in), +1/sqrt(fan_in)]),
    stored as (in_features, out_features) so the math is x @ W + b."""
    ks = jax.random.split(key, 6)

    def lin(kw, kb, fan_in, fan_out):
        bound = 1.0 / jnp.sqrt(jnp.float32(fan_in))
        w = jax.random.uniform(kw, (fan_in, fan_out), jnp.float32, -bound, bound)
        b = jax.random.uniform(kb, (1, fan_out), jnp.float32, -bound, bound)
        return w, b

    w1, b1 = lin(ks[0], ks[1], input_dim, hidden)
    w2, b2 = lin(ks[2], ks[3], hidden, hidden)
    w3, b3 = lin(ks[4], ks[5], hidden, 1)
    return (w1, b1, w2, b2, w3, b3)


def reference_forward(x, params, compute_dtype=jnp.float32, precision=None):
    """Pure-JAX reference mirroring the kernel's precision policy: matmul
    operands in `compute_dtype`, f32 accumulation, f32 biases / fc3 (VPU)."""
    w1, b1, w2, b2, w3, b3 = params
    h1 = jnp.dot(x.astype(compute_dtype), w1.astype(compute_dtype),
                 preferred_element_type=jnp.float32, precision=precision)
    h1 = jnp.maximum(h1 + b1.reshape(1, -1), 0.0)
    h2 = jnp.dot(h1.astype(compute_dtype), w2.astype(compute_dtype),
                 preferred_element_type=jnp.float32, precision=precision)
    h2 = jnp.maximum(h2 + b2.reshape(1, -1), 0.0)
    return jnp.sum(h2 * w3[:, 0], axis=-1, keepdims=True) + b3.reshape(1, 1)


if __name__ == "__main__":
    key = jax.random.PRNGKey(0)
    k_x, k_p = jax.random.split(key)

    batch = 256
    input_dim = 16   # e.g. environment state dimension

    x = jax.random.normal(k_x, (batch, input_dim), dtype=jnp.float32)
    params = init_params(k_p, input_dim)

    # Weight prep hoisted out of the forward: done once per parameter update.
    prep_bf16 = prepare_params(params, compute_dtype=jnp.bfloat16)
    prep_f32 = prepare_params(params, compute_dtype=jnp.float32)

    # Default bf16 MXU fast path.  With batch=256 the packed-row tile is 64,
    # so the grid has 2 steps -> exercises pipelining and the v7x TC split.
    out = jax.block_until_ready(value_network_forward(x, prep_bf16))
    assert out.shape == (batch, 1)

    # Matched-precision reference (bf16 matmul operands, f32 accumulation).
    ref_bf16 = reference_forward(x, params, compute_dtype=jnp.bfloat16)
    err_bf16 = jnp.max(jnp.abs(out - ref_bf16))
    assert jnp.allclose(out, ref_bf16, atol=1e-3, rtol=1e-3), (
        f"bf16 kernel mismatch vs bf16 reference: max abs err = {err_bf16}")

    # f32 compute path for parity with the f32 PyTorch module (tolerance kept
    # loose so the check is robust across XLA/MXU f32 precision modes).
    out_f32 = jax.block_until_ready(value_network_forward(x, prep_f32))
    ref_f32 = reference_forward(x, params, compute_dtype=jnp.float32,
                                precision=jax.lax.Precision.HIGHEST)
    err_f32 = jnp.max(jnp.abs(out_f32 - ref_f32))
    assert jnp.allclose(out_f32, ref_f32, atol=1e-2, rtol=1e-2), (
        f"f32 kernel mismatch vs f32 reference: max abs err = {err_f32}")

    print("KERNEL_OK")
</pallas_src>

<mosaic_0001>
module attributes {stable_mosaic.version = 11 : i64} {
  func.func @value_net_kernel(%arg0: i32, %arg1: memref<64x32xf32, #tpu.memory_space<vmem>>, %arg2: memref<32x128xbf16, #tpu.memory_space<vmem>>, %arg3: memref<1x128xf32, #tpu.memory_space<vmem>>, %arg4: memref<128x128xbf16, #tpu.memory_space<vmem>>, %arg5: memref<1x128xf32, #tpu.memory_space<vmem>>, %arg6: memref<1x128xf32, #tpu.memory_space<vmem>>, %arg7: memref<1x1xf32, #tpu.memory_space<smem>>, %arg8: memref<64x2xf32, #tpu.memory_space<vmem>>) attributes {dimension_semantics = [#tpu.dimension_semantics<parallel>], iteration_bounds = array<i64: 2>, scalar_prefetch = 0 : i64, scratch_operands = 0 : i64, tpu.core_type = #tpu.core_type<tc>, window_params = [{transform_indices = @transform_0, window_bounds = array<i64: 64, 32>}, {pipeline_mode = #tpu.pipeline_mode<synchronous>, transform_indices = @transform_1, window_bounds = array<i64: 32, 128>}, {pipeline_mode = #tpu.pipeline_mode<synchronous>, transform_indices = @transform_2, window_bounds = array<i64: 1, 128>}, {pipeline_mode = #tpu.pipeline_mode<synchronous>, transform_indices = @transform_3, window_bounds = array<i64: 128, 128>}, {pipeline_mode = #tpu.pipeline_mode<synchronous>, transform_indices = @transform_4, window_bounds = array<i64: 1, 128>}, {pipeline_mode = #tpu.pipeline_mode<synchronous>, transform_indices = @transform_5, window_bounds = array<i64: 1, 128>}, {transform_indices = @transform_6, window_bounds = array<i64: 1, 1>}, {transform_indices = @transform_7, window_bounds = array<i64: 64, 2>}]} {
    %c0 = arith.constant 0 : index
    %c0_0 = arith.constant 0 : index
    %0 = vector.load %arg1[%c0, %c0_0] : memref<64x32xf32, #tpu.memory_space<vmem>>, vector<64x32xf32>
    %1 = arith.truncf %0 : vector<64x32xf32> to vector<64x32xbf16>
    %c0_1 = arith.constant 0 : index
    %c0_2 = arith.constant 0 : index
    %2 = vector.load %arg2[%c0_1, %c0_2] : memref<32x128xbf16, #tpu.memory_space<vmem>>, vector<32x128xbf16>
    %cst = arith.constant dense<0.000000e+00> : vector<64x128xf32>
    %3 = tpu.matmul %1, %2, %cst {dimension_numbers = #tpu.dot_dimension_numbers<[1], [0], [0], [1], [0, 0, 1, 1], [], []>} : vector<64x32xbf16>, vector<32x128xbf16>, vector<64x128xf32> -> vector<64x128xf32>
    %c0_3 = arith.constant 0 : index
    %c0_4 = arith.constant 0 : index
    %4 = vector.load %arg3[%c0_3, %c0_4] : memref<1x128xf32, #tpu.memory_space<vmem>>, vector<1x128xf32>
    %5 = vector.broadcast %4 : vector<1x128xf32> to vector<64x128xf32>
    %6 = arith.addf %3, %5 : vector<64x128xf32>
    %cst_5 = arith.constant 0.000000e+00 : f32
    %7 = vector.broadcast %cst_5 : f32 to vector<64x128xf32>
    %8 = arith.maximumf %6, %7 : vector<64x128xf32>
    %9 = arith.truncf %8 : vector<64x128xf32> to vector<64x128xbf16>
    %c0_6 = arith.constant 0 : index
    %c0_7 = arith.constant 0 : index
    %10 = vector.load %arg4[%c0_6, %c0_7] : memref<128x128xbf16, #tpu.memory_space<vmem>>, vector<128x128xbf16>
    %cst_8 = arith.constant dense<0.000000e+00> : vector<64x128xf32>
    %11 = tpu.matmul %9, %10, %cst_8 {dimension_numbers = #tpu.dot_dimension_numbers<[1], [0], [0], [1], [0, 0, 1, 1], [], []>} : vector<64x128xbf16>, vector<128x128xbf16>, vector<64x128xf32> -> vector<64x128xf32>
    %c0_9 = arith.constant 0 : index
    %c0_10 = arith.constant 0 : index
    %12 = vector.load %arg5[%c0_9, %c0_10] : memref<1x128xf32, #tpu.memory_space<vmem>>, vector<1x128xf32>
    %13 = vector.broadcast %12 : vector<1x128xf32> to vector<64x128xf32>
    %14 = arith.addf %11, %13 : vector<64x128xf32>
    %cst_11 = arith.constant 0.000000e+00 : f32
    %15 = vector.broadcast %cst_11 : f32 to vector<64x128xf32>
    %16 = arith.maximumf %14, %15 : vector<64x128xf32>
    %c0_12 = arith.constant 0 : index
    %c0_13 = arith.constant 0 : index
    %17 = vector.load %arg6[%c0_12, %c0_13] : memref<1x128xf32, #tpu.memory_space<vmem>>, vector<1x128xf32>
    %18 = vector.broadcast %17 : vector<1x128xf32> to vector<64x128xf32>
    %19 = arith.mulf %16, %18 : vector<64x128xf32>
    %cst_14 = arith.constant dense<0.000000e+00> : vector<64xf32>
    %20 = vector.multi_reduction <add>, %19, %cst_14 [1] : vector<64x128xf32> to vector<64xf32>
    %21 = vector.shape_cast %20 : vector<64xf32> to vector<64x1xf32>
    %22 = tpu.iota {dimensions = array<i32: 1>} : vector<64x128xi32>
    %c64_i32 = arith.constant 64 : i32
    %23 = vector.broadcast %c64_i32 : i32 to vector<64x128xi32>
    %24 = arith.cmpi slt, %22, %23 : vector<64x128xi32>
    %cst_15 = arith.constant 0.000000e+00 : f32
    %25 = vector.broadcast %cst_15 : f32 to vector<64x128xf32>
    %26 = arith.select %24, %19, %25 : vector<64x128xi1>, vector<64x128xf32>
    %cst_16 = arith.constant dense<0.000000e+00> : vector<64xf32>
    %27 = vector.multi_reduction <add>, %26, %cst_16 [1] : vector<64x128xf32> to vector<64xf32>
    %28 = vector.shape_cast %27 : vector<64xf32> to vector<64x1xf32>
    %c0_17 = arith.constant 0 : index
    %c0_18 = arith.constant 0 : index
    %29 = memref.load %arg7[%c0_17, %c0_18] : memref<1x1xf32, #tpu.memory_space<smem>>
    %30 = vector.broadcast %29 : f32 to vector<64x1xf32>
    %31 = arith.addf %28, %30 : vector<64x1xf32>
    %c0_19 = arith.constant 0 : index
    %c0_20 = arith.constant 0 : index
    %32 = vector.load %arg8[%c0_19, %c0_20] : memref<64x2xf32, #tpu.memory_space<vmem>>, vector<64x1xf32>
    tpu.vector_store %arg8[%c0_19, %c0_20], %31 {strides = array<i32>} : memref<64x2xf32, #tpu.memory_space<vmem>>, vector<64x1xf32>,
    %33 = arith.subf %21, %28 : vector<64x1xf32>
    %34 = vector.broadcast %29 : f32 to vector<64x1xf32>
    %35 = arith.addf %33, %34 : vector<64x1xf32>
    %c0_21 = arith.constant 0 : index
    %c1 = arith.constant 1 : index
    %36 = vector.load %arg8[%c0_21, %c1] : memref<64x2xf32, #tpu.memory_space<vmem>>, vector<64x1xf32>
    tpu.vector_store %arg8[%c0_21, %c1], %35 {strides = array<i32>} : memref<64x2xf32, #tpu.memory_space<vmem>>, vector<64x1xf32>,
    return
  }
  func.func @transform_0(%arg0: i32) -> (i32, i32) {
    %c0_i32 = arith.constant 0 : i32
    %c0_i32_0 = arith.constant 0 : i32
    return %arg0, %c0_i32 : i32, i32
  }
  func.func @transform_1(%arg0: i32) -> (i32, i32) {
    %c0_i32 = arith.constant 0 : i32
    %c0_i32_0 = arith.constant 0 : i32
    %c0_i32_1 = arith.constant 0 : i32
    return %c0_i32, %c0_i32_0 : i32, i32
  }
  func.func @transform_2(%arg0: i32) -> (i32, i32) {
    %c0_i32 = arith.constant 0 : i32
    %c0_i32_0 = arith.constant 0 : i32
    %c0_i32_1 = arith.constant 0 : i32
    return %c0_i32, %c0_i32_0 : i32, i32
  }
  func.func @transform_3(%arg0: i32) -> (i32, i32) {
    %c0_i32 = arith.constant 0 : i32
    %c0_i32_0 = arith.constant 0 : i32
    %c0_i32_1 = arith.constant 0 : i32
    return %c0_i32, %c0_i32_0 : i32, i32
  }
  func.func @transform_4(%arg0: i32) -> (i32, i32) {
    %c0_i32 = arith.constant 0 : i32
    %c0_i32_0 = arith.constant 0 : i32
    %c0_i32_1 = arith.constant 0 : i32
    return %c0_i32, %c0_i32_0 : i32, i32
  }
  func.func @transform_5(%arg0: i32) -> (i32, i32) {
    %c0_i32 = arith.constant 0 : i32
    %c0_i32_0 = arith.constant 0 : i32
    %c0_i32_1 = arith.constant 0 : i32
    return %c0_i32, %c0_i32_0 : i32, i32
  }
  func.func @transform_6(%arg0: i32) -> (i32, i32) {
    %c0_i32 = arith.constant 0 : i32
    %c0_i32_0 = arith.constant 0 : i32
    %c0_i32_1 = arith.constant 0 : i32
    return %c0_i32, %c0_i32_0 : i32, i32
  }
  func.func @transform_7(%arg0: i32) -> (i32, i32) {
    %c0_i32 = arith.constant 0 : i32
    %c0_i32_0 = arith.constant 0 : i32
    return %arg0, %c0_i32 : i32, i32
  }
}

</mosaic_0001>

<llo_original>
// kernel: tpu_custom_call.1
$region0: #{tpu_custom_call.1}
  #allocation0 [shape = 'u32[]', space=smem, size = 0x4, offset = 0x4, fixed_abs, tag = 'smem constant byte address 0x4 - core index']
  #allocation1 [shape = 'u32[144,128]{1,0:T(1,128)}', space=vmem, size = 0x12000, scoped, tag = 'internal scratch']
  #allocation2 [shape = 'f32[1,1]{1,0:T(1,128)S(6)}', space=smem, size = 0x200, scoped, tag = 'scoped memory for tpu_custom_call.1']
  %s0 = inlined_call_operand.vmem [shape: f32[128,32], index: 0, kind: input, shape index: {}]
  %s1 = inlined_call_operand.vmem [shape: bf16[32,128], index: 1, kind: input, shape index: {}]
  %s2 = inlined_call_operand.vmem [shape: f32[1,128], index: 2, kind: input, shape index: {}]
  %s3 = inlined_call_operand.vmem [shape: bf16[128,128], index: 3, kind: input, shape index: {}]
  %s4 = inlined_call_operand.vmem [shape: f32[1,128], index: 4, kind: input, shape index: {}]
  %s5 = inlined_call_operand.vmem [shape: f32[1,128], index: 5, kind: input, shape index: {}]
  %s6 = inlined_call_operand.<no memory space> [shape: f32[1,1], index: 6, kind: input, shape index: {}]
  %s7 = inlined_call_operand.vmem [shape: f32[128,2], index: 7, kind: output, shape index: {}]
  %s8 = sld [smem:[#allocation0]]
  $region61: #{tpu_custom_call.1} parent=0
    _
  %s10 = ssub.s32 1, %s8
  %s11 = scalar_select 0, %s10, %s8
  %12 = sst [smem:[#allocation2]] %s6
  loop: start=0, step=1, limit=4
  $region2: #{tpu_custom_call.1} parent=0 // loop_pre_header
    _
  $region3: #{tpu_custom_call.1} parent=0 // loop_header
    %s14 = sphi 0, %s18
    %p15 = scmp.ge.s32.totalorder %s14, 4
    %s24 = sphi 0, %s26
    %s27 = sphi 0, %s24
    %s28 = sphi 0, %s27
    %s44 = sphi 0, %s28
    %s48 = sphi 0, %s48
    %s50 = sphi 0, %s48
    %s51 = sphi 0, %s50
    %s65 = sphi 0, %s51
    %s69 = sphi 0, %s69
    %s71 = sphi 0, %s69
    %s72 = sphi 0, %s71
    %s86 = sphi 0, %s72
    %s90 = sphi 0, %s90
    %s92 = sphi 0, %s90
    %s93 = sphi 0, %s92
    %s107 = sphi 0, %s93
    %s111 = sphi 0, %s111
    %s113 = sphi 0, %s111
    %s114 = sphi 0, %s113
    %s128 = sphi 0, %s114
    %s132 = sphi 0, %s132
    %s134 = sphi 0, %s132
    %s135 = sphi 0, %s134
    %s149 = sphi 0, %s135
    %s153 = sphi 0, %s153
    %s155 = sphi 0, %s153
    %s156 = sphi 0, %s155
    %s170 = sphi 0, %s156
    %s176 = sphi 0, %s178
    %s179 = sphi 0, %s176
    %s180 = sphi 0, %s179
    %s196 = sphi 0, %s180
  $region4: #{tpu_custom_call.1} parent=0 // loop_header_branch
    %17 = sbr.rel (%p15) target = $region8
  $region5: #{tpu_custom_call.1} parent=0 // loop_body
    %s19 = ssub.s32 %s14, 1
    %s20 = ssub.s32 %s14, 2
    %s21 = sadd.s32 %s14, 1
    %s22 = ssub.s32 %s14, %s21
    %p23 = scmp.eq.s32.totalorder %s22, 0
    %s25 = sadd.s32 %s24, 1
    %s26 = scalar_select %p23, %s24, %s25
    %p29 = pneg %p23
    %p30 = scmp.eq.s32.totalorder %s14, 1
    %p31 = por %p29, %p30
    %p32 = scmp.ne.s32.totalorder %s24, %s27
    %p33 = scmp.eq.s32.totalorder %s14, 0
    %p34 = por %p32, %p33
    %p35 = scmp.ne.s32.totalorder %s24, %s27
    %p36 = scmp.eq.s32.totalorder %s19, 1
    %p37 = por %p35, %p36
    %p38 = scmp.ne.s32.totalorder %s27, %s28
    %p39 = scmp.eq.s32.totalorder %s19, 0
    %p40 = por %p38, %p39
    %p41 = scmp.ne.s32.totalorder %s27, %s28
    %p42 = scmp.eq.s32.totalorder %s20, 1
    %p43 = por %p41, %p42
    %p45 = scmp.ne.s32.totalorder %s28, %s44
    %p46 = scmp.eq.s32.totalorder %s20, 0
    %p47 = por %p45, %p46
    %s49 = sadd.s32 %s48, 1
    %p52 = scmp.eq.s32.totalorder %s14, 1
    %p53 = scmp.ne.s32.totalorder %s48, %s50
    %p54 = scmp.eq.s32.totalorder %s14, 0
    %p55 = por %p53, %p54
    %p56 = scmp.ne.s32.totalorder %s48, %s50
    %p57 = scmp.eq.s32.totalorder %s19, 1
    %p58 = por %p56, %p57
    %p59 = scmp.ne.s32.totalorder %s50, %s51
    %p60 = scmp.eq.s32.totalorder %s19, 0
    %p61 = por %p59, %p60
    %p62 = scmp.ne.s32.totalorder %s50, %s51
    %p63 = scmp.eq.s32.totalorder %s20, 1
    %p64 = por %p62, %p63
    %p66 = scmp.ne.s32.totalorder %s51, %s65
    %p67 = scmp.eq.s32.totalorder %s20, 0
    %p68 = por %p66, %p67
    %s70 = sadd.s32 %s69, 1
    %p73 = scmp.eq.s32.totalorder %s14, 1
    %p74 = scmp.ne.s32.totalorder %s69, %s71
    %p75 = scmp.eq.s32.totalorder %s14, 0
    %p76 = por %p74, %p75
    %p77 = scmp.ne.s32.totalorder %s69, %s71
    %p78 = scmp.eq.s32.totalorder %s19, 1
    %p79 = por %p77, %p78
    %p80 = scmp.ne.s32.totalorder %s71, %s72
    %p81 = scmp.eq.s32.totalorder %s19, 0
    %p82 = por %p80, %p81
    %p83 = scmp.ne.s32.totalorder %s71, %s72
    %p84 = scmp.eq.s32.totalorder %s20, 1
    %p85 = por %p83, %p84
    %p87 = scmp.ne.s32.totalorder %s72, %s86
    %p88 = scmp.eq.s32.totalorder %s20, 0
    %p89 = por %p87, %p88
    %s91 = sadd.s32 %s90, 1
    %p94 = scmp.eq.s32.totalorder %s14, 1
    %p95 = scmp.ne.s32.totalorder %s90, %s92
    %p96 = scmp.eq.s32.totalorder %s14, 0
    %p97 = por %p95, %p96
    %p98 = scmp.ne.s32.totalorder %s90, %s92
    %p99 = scmp.eq.s32.totalorder %s19, 1
    %p100 = por %p98, %p99
    %p101 = scmp.ne.s32.totalorder %s92, %s93
    %p102 = scmp.eq.s32.totalorder %s19, 0
    %p103 = por %p101, %p102
    %p104 = scmp.ne.s32.totalorder %s92, %s93
    %p105 = scmp.eq.s32.totalorder %s20, 1
    %p106 = por %p104, %p105
    %p108 = scmp.ne.s32.totalorder %s93, %s107
    %p109 = scmp.eq.s32.totalorder %s20, 0
    %p110 = por %p108, %p109
    %s112 = sadd.s32 %s111, 1
    %p115 = scmp.eq.s32.totalorder %s14, 1
    %p116 = scmp.ne.s32.totalorder %s111, %s113
    %p117 = scmp.eq.s32.totalorder %s14, 0
    %p118 = por %p116, %p117
    %p119 = scmp.ne.s32.totalorder %s111, %s113
    %p120 = scmp.eq.s32.totalorder %s19, 1
    %p121 = por %p119, %p120
    %p122 = scmp.ne.s32.totalorder %s113, %s114
    %p123 = scmp.eq.s32.totalorder %s19, 0
    %p124 = por %p122, %p123
    %p125 = scmp.ne.s32.totalorder %s113, %s114
    %p126 = scmp.eq.s32.totalorder %s20, 1
    %p127 = por %p125, %p126
    %p129 = scmp.ne.s32.totalorder %s114, %s128
    %p130 = scmp.eq.s32.totalorder %s20, 0
    %p131 = por %p129, %p130
    %s133 = sadd.s32 %s132, 1
    %p136 = scmp.eq.s32.totalorder %s14, 1
    %p137 = scmp.ne.s32.totalorder %s132, %s134
    %p138 = scmp.eq.s32.totalorder %s14, 0
    %p139 = por %p137, %p138
    %p140 = scmp.ne.s32.totalorder %s132, %s134
    %p141 = scmp.eq.s32.totalorder %s19, 1
    %p142 = por %p140, %p141
    %p143 = scmp.ne.s32.totalorder %s134, %s135
    %p144 = scmp.eq.s32.totalorder %s19, 0
    %p145 = por %p143, %p144
    %p146 = scmp.ne.s32.totalorder %s134, %s135
    %p147 = scmp.eq.s32.totalorder %s20, 1
    %p148 = por %p146, %p147
    %p150 = scmp.ne.s32.totalorder %s135, %s149
    %p151 = scmp.eq.s32.totalorder %s20, 0
    %p152 = por %p150, %p151
    %s154 = sadd.s32 %s153, 1
    %p157 = scmp.eq.s32.totalorder %s14, 1
    %p158 = scmp.ne.s32.totalorder %s153, %s155
    %p159 = scmp.eq.s32.totalorder %s14, 0
    %p160 = por %p158, %p159
    %p161 = scmp.ne.s32.totalorder %s153, %s155
    %p162 = scmp.eq.s32.totalorder %s19, 1
    %p163 = por %p161, %p162
    %p164 = scmp.ne.s32.totalorder %s155, %s156
    %p165 = scmp.eq.s32.totalorder %s19, 0
    %p166 = por %p164, %p165
    %p167 = scmp.ne.s32.totalorder %s155, %s156
    %p168 = scmp.eq.s32.totalorder %s20, 1
    %p169 = por %p167, %p168
    %p171 = scmp.ne.s32.totalorder %s156, %s170
    %p172 = scmp.eq.s32.totalorder %s20, 0
    %p173 = por %p171, %p172
    %s174 = ssub.s32 %s14, %s21
    %p175 = scmp.eq.s32.totalorder %s174, 0
    %s177 = sadd.s32 %s176, 1
    %s178 = scalar_select %p175, %s176, %s177
    %p181 = pneg %p175
    %p182 = scmp.eq.s32.totalorder %s14, 1
    %p183 = por %p181, %p182
    %p184 = scmp.ne.s32.totalorder %s176, %s179
    %p185 = scmp.eq.s32.totalorder %s14, 0
    %p186 = por %p184, %p185
    %p187 = scmp.ne.s32.totalorder %s176, %s179
    %p188 = scmp.eq.s32.totalorder %s19, 1
    %p189 = por %p187, %p188
    %p190 = scmp.ne.s32.totalorder %s179, %s180
    %p191 = scmp.eq.s32.totalorder %s19, 0
    %p192 = por %p190, %p191
    %p193 = scmp.ne.s32.totalorder %s179, %s180
    %p194 = scmp.eq.s32.totalorder %s20, 1
    %p195 = por %p193, %p194
    %p197 = scmp.ne.s32.totalorder %s180, %s196
    %p198 = scmp.eq.s32.totalorder %s20, 0
    %p199 = por %p197, %p198
    %p200 = scmp.le.s32.totalorder 1, %s14
    %p201 = scmp.lt.s32.totalorder %s14, 3
    %p202 = pnand %p200, %p201
    %p203 = pneg %p202
    // Predicated region
    $region9: #{tpu_custom_call.1} parent=5 // pred_check
      _
    $region10: #{tpu_custom_call.1} parent=5 // pred_check_branch
      %205 = sbr.rel (%p202) target = $region12
    $region11: #{tpu_custom_call.1} parent=5 // pred_region
      %s206 = ssub.s32 %s14, 1
      // Predicated region
      $region13: #{tpu_custom_call.1} parent=11 // pred_check
        %p207 = pneg %p61
      $region14: #{tpu_custom_call.1} parent=11 // pred_check_branch
        %209 = sbr.rel (%p207) target = $region16
      $region15: #{tpu_custom_call.1} parent=11 // pred_region
        _
      $region16: #{tpu_custom_call.1} parent=11 // pred_fallthru
        _
      // Predicated region
      $region17: #{tpu_custom_call.1} parent=11 // pred_check
        %p210 = pneg %p82
      $region18: #{tpu_custom_call.1} parent=11 // pred_check_branch
        %212 = sbr.rel (%p210) target = $region20
      $region19: #{tpu_custom_call.1} parent=11 // pred_region
        _
      $region20: #{tpu_custom_call.1} parent=11 // pred_fallthru
        _
      // Predicated region
      $region21: #{tpu_custom_call.1} parent=11 // pred_check
        %p213 = pneg %p103
      $region22: #{tpu_custom_call.1} parent=11 // pred_check_branch
        %215 = sbr.rel (%p213) target = $region24
      $region23: #{tpu_custom_call.1} parent=11 // pred_region
        _
      $region24: #{tpu_custom_call.1} parent=11 // pred_fallthru
        _
      // Predicated region
      $region25: #{tpu_custom_call.1} parent=11 // pred_check
        %p216 = pneg %p124
      $region26: #{tpu_custom_call.1} parent=11 // pred_check_branch
        %218 = sbr.rel (%p216) target = $region28
      $region27: #{tpu_custom_call.1} parent=11 // pred_region
        _
      $region28: #{tpu_custom_call.1} parent=11 // pred_fallthru
        _
      // Predicated region
      $region29: #{tpu_custom_call.1} parent=11 // pred_check
        %p219 = pneg %p145
      $region30: #{tpu_custom_call.1} parent=11 // pred_check_branch
        %221 = sbr.rel (%p219) target = $region32
      $region31: #{tpu_custom_call.1} parent=11 // pred_region
        _
      $region32: #{tpu_custom_call.1} parent=11 // pred_fallthru
        _
      // Predicated region
      $region33: #{tpu_custom_call.1} parent=11 // pred_check
        %p222 = pneg %p166
      $region34: #{tpu_custom_call.1} parent=11 // pred_check_branch
        %224 = sbr.rel (%p222) target = $region36
      $region35: #{tpu_custom_call.1} parent=11 // pred_region
        _
      $region36: #{tpu_custom_call.1} parent=11 // pred_fallthru
        _
    $region12: #{tpu_custom_call.1} parent=5 // pred_fallthru
      _
    %p225 = scmp.lt.s32.totalorder %s14, 2
    // Predicated region
    $region37: #{tpu_custom_call.1} parent=5 // pred_check
      %p226 = pneg %p225
    $region38: #{tpu_custom_call.1} parent=5 // pred_check_branch
      %228 = sbr.rel (%p226) target = $region40
    $region39: #{tpu_custom_call.1} parent=5 // pred_region
      // Predicated region
      $region41: #{tpu_custom_call.1} parent=39 // pred_check
        %p229 = pneg %p34
      $region42: #{tpu_custom_call.1} parent=39 // pred_check_branch
        %231 = sbr.rel (%p229) target = $region44
      $region43: #{tpu_custom_call.1} parent=39 // pred_region
        %s232 = smul.u32 8, %s14
        %p233 = scmp.lt.s32.totalorder %s232, 15
        %s234 = scalar_select %p233, %s232, 15
        %s235 = smul.addr %s234, 8
        %s236 = scalar_lea.vmem %s0, %s235
        %s237 = smul.u32 8, %s14
      $region44: #{tpu_custom_call.1} parent=39 // pred_fallthru
        _
    $region40: #{tpu_custom_call.1} parent=5 // pred_fallthru
      _
    %p238 = scmp.le.s32.totalorder 1, %s14
    %p239 = scmp.lt.s32.totalorder %s14, 3
    %p240 = pnand %p238, %p239
    %p241 = pneg %p240
    // Predicated region
    $region45: #{tpu_custom_call.1} parent=5 // pred_check
      _
    $region46: #{tpu_custom_call.1} parent=5 // pred_check_branch
      %243 = sbr.rel (%p240) target = $region48
    $region47: #{tpu_custom_call.1} parent=5 // pred_region
      %s244 = ssub.s32 %s14, 1
      %s245 = smul.u32 8, %s19
      %p246 = scmp.lt.s32.totalorder %s245, 15
      %s247 = scalar_select %p246, %s245, 15
      %s248 = smul.addr %s247, 8
      %s249 = scalar_lea.vmem %s0, %s248
      %p250 = pneg %p40
      %p251 = pneg %p37
      %p252 = pneg %p61
      %p253 = pneg %p58
      %p254 = pneg %p82
      %p255 = pneg %p79
      %p256 = pneg %p103
      %p257 = pneg %p100
      %p258 = pneg %p124
      %p259 = pneg %p121
      %p260 = pneg %p145
      %p261 = pneg %p142
      %p262 = pneg %p166
      %p263 = pneg %p163
      %p264 = pneg %p192
      %p265 = pneg %p189
      %s266 = smul.u32 8, %s19
      %p267 = scmp.lt.s32.totalorder %s266, 15
      %s268 = scalar_select %p267, %s266, 15
      %s269 = smul.addr %s268, 8
      %s270 = scalar_lea.vmem %s7, %s269
      %s271 = smul.u32 8, %s19
      %p272 = scmp.lt.s32.totalorder %s271, 15
      %s273 = scalar_select %p272, %s271, 15
      %s274 = smul.addr %s273, 8
      %s275 = scalar_lea.vmem %s0, %s274
      %s276 = smul.u32 8, %s19
      %s277 = smul.u32 8, %s19
      %p278 = scmp.lt.s32.totalorder %s277, 15
      %s279 = scalar_select %p278, %s277, 15
      %s280 = smul.addr %s279, 8
      %s281 = scalar_lea.vmem %s7, %s280
      %s282 = smul.u32 8, %s19
      %v284 = vld [vmem:[%s275] sm:$0xff]
      %v285 = vld [vmem:[%s275 + $0x8] sm:$0xff]
      %v286 = vld [vmem:[%s275 + $0x10] sm:$0xff]
      %v287 = vld [vmem:[%s275 + $0x18] sm:$0xff]
      %v288 = vld [vmem:[%s275 + $0x20] sm:$0xff]
      %v289 = vld [vmem:[%s275 + $0x28] sm:$0xff]
      %v290 = vld [vmem:[%s275 + $0x30] sm:$0xff]
      %v291 = vld [vmem:[%s275 + $0x38] sm:$0xff]
      %v292 = vpack.c.bf16 %v285, %v284
      %v293 = vpack.c.bf16 %v287, %v286
      %v294 = vpack.c.bf16 %v289, %v288
      %v295 = vpack.c.bf16 %v291, %v290
      %v296 = vld [vmem:[%s1] sm:$0xf]
      %v297 = vld [vmem:[%s1 + $0x4] sm:$0xf]
      %v298 = vld [vmem:[%s1 + $0x8] sm:$0xf]
      %v299 = vld [vmem:[%s1 + $0xc] sm:$0xf]
      %v300 = vld [vmem:[%s2] sm:$0x1]
      %v302 = vlaneseq
      %v303 = vshrl.u32 %v302, 7
      %v304 = vsub.s32 0, %v303
      %v305 = vrot.slane %v300, %v304
      %v311 = vunpack.c.l.b16 %v296
      %v312 = vunpack.c.l.b16 %v297
      %v313 = vunpack.c.l.b16 %v298
      %v314 = vunpack.c.l.b16 %v299
      %v315 = vpack.c.b16 %v312, %v311
      %v316 = vpack.c.b16 %v314, %v313
      %vm319 = vcmask 261120
      %v321 = vsel %vm319, %v292, 0
      %v324 = vsel %vm319, %v293, 0
      %v327 = vsel %vm319, %v294, 0
      %v330 = vsel %vm319, %v295, 0
      %332 = vmatprep.subr.bf16.mxu0 0
      %333 = vmatpush1.bf16.msra.mxu0 0
      %334 = vmatprep.subr.bf16.mxu0 0
      %335 = vmatpush1.bf16.msra.mxu0 0
      %336 = vmatprep.subr.bf16.mxu0 0
      %337 = vmatpush1.bf16.msra.mxu0 0
      %338 = vmatprep.subr.bf16.mxu0 0
      %339 = vmatpush1.bf16.msra.mxu0 0
      %340 = vmatprep.subr.bf16.mxu0 0
      %341 = vmatpush1.bf16.msra.mxu0 0
      %342 = vmatprep.subr.bf16.mxu0 0
      %343 = vmatpush1.bf16.msra.mxu0 0
      %344 = vmatprep.subr.bf16.mxu0 0
      %345 = vmatpush1.bf16.msra.mxu0 %v316
      %346 = vmatprep.subr.bf16.mxu0 0
      %347 = vmatpush1.bf16.msra.mxu0 %v315
      %348 = vmatprep.subr.bf16.mxu0 0
      %349 = vmatpush2.bf16.msra.mxu0 0
      %350 = vmatprep.subr.bf16.mxu0 0
      %351 = vmatpush2.bf16.msra.mxu0 0
      %352 = vmatprep.subr.bf16.mxu0 0
      %353 = vmatpush2.bf16.msra.mxu0 0
      %354 = vmatprep.subr.bf16.mxu0 0
      %355 = vmatpush2.bf16.msra.mxu0 0
      %356 = vmatprep.subr.bf16.mxu0 0
      %357 = vmatpush2.bf16.msra.mxu0 0
      %358 = vmatprep.subr.bf16.mxu0 0
      %359 = vmatpush2.bf16.msra.mxu0 0
      %360 = vmatprep.subr.bf16.mxu0 0
      %361 = vmatpush2.bf16.msra.mxu0 0
      %362 = vmatprep.subr.bf16.mxu0 0
      %363 = vmatpush2.bf16.msra.mxu0 0
      %364 = vmatprep.mubr.bf16.mxu0 0
      %365 = vmatmul.mubr.bf16.gmra.mxu0 %v321
      %v366 = vpop.f32.mrf.mxu0
      %v367 = vadd.f32 %v305, %v366
      %v368 = vpop.f32.mrf.mxu0
      %v369 = vpop.f32.mrf.mxu0
      %v370 = vadd.f32 %v305, %v369
      %v371 = vpop.f32.mrf.mxu0
      %372 = vmatprep.mubr.bf16.mxu0 0
      %373 = vmatmul.mubr.bf16.gmra.mxu0 %v324
      %v374 = vpop.f32.mrf.mxu0
      %v375 = vadd.f32 %v305, %v374
      %v376 = vpop.f32.mrf.mxu0
      %v377 = vpop.f32.mrf.mxu0
      %v378 = vadd.f32 %v305, %v377
      %v379 = vpop.f32.mrf.mxu0
      %380 = vmatprep.mubr.bf16.mxu0 0
      %381 = vmatmul.mubr.bf16.gmra.mxu0 %v327
      %v382 = vpop.f32.mrf.mxu0
      %v383 = vadd.f32 %v305, %v382
      %v384 = vpop.f32.mrf.mxu0
      %v385 = vpop.f32.mrf.mxu0
      %v386 = vadd.f32 %v305, %v385
      %v387 = vpop.f32.mrf.mxu0
      %388 = vmatprep.mubr.bf16.mxu0 0
      %389 = vmatmul.mubr.bf16.gmra.mxu0 %v330
      %v390 = vpop.f32.mrf.mxu0
      %v391 = vadd.f32 %v305, %v390
      %v392 = vpop.f32.mrf.mxu0
      %v393 = vpop.f32.mrf.mxu0
      %v394 = vadd.f32 %v305, %v393
      %v395 = vpop.f32.mrf.mxu0
      %396 = vdwg.mxu0
      %v397 = vmax.f32 %v367, 0.0
      %v398 = vmax.f32 %v370, 0.0
      %v399 = vmax.f32 %v375, 0.0
      %v400 = vmax.f32 %v378, 0.0
      %v401 = vmax.f32 %v383, 0.0
      %v402 = vmax.f32 %v386, 0.0
      %v403 = vmax.f32 %v391, 0.0
      %v404 = vmax.f32 %v394, 0.0
      %v405 = vpack.c.bf16 %v398, %v397
      %v406 = vpack.c.bf16 %v400, %v399
      %v407 = vpack.c.bf16 %v402, %v401
      %v408 = vpack.c.bf16 %v404, %v403
      %v409 = vld [vmem:[%s3] sm:$0xf]
      %v410 = vld [vmem:[%s3 + $0x4] sm:$0xf]
      %v411 = vld [vmem:[%s3 + $0x8] sm:$0xf]
      %v412 = vld [vmem:[%s3 + $0xc] sm:$0xf]
      %v413 = vld [vmem:[%s3 + $0x10] sm:$0xf]
      %v414 = vld [vmem:[%s3 + $0x14] sm:$0xf]
      %v415 = vld [vmem:[%s3 + $0x18] sm:$0xf]
      %v416 = vld [vmem:[%s3 + $0x1c] sm:$0xf]
      %v417 = vld [vmem:[%s3 + $0x20] sm:$0xf]
      %v418 = vld [vmem:[%s3 + $0x24] sm:$0xf]
      %v419 = vld [vmem:[%s3 + $0x28] sm:$0xf]
      %v420 = vld [vmem:[%s3 + $0x2c] sm:$0xf]
      %v421 = vld [vmem:[%s3 + $0x30] sm:$0xf]
      %v422 = vld [vmem:[%s3 + $0x34] sm:$0xf]
      %v423 = vld [vmem:[%s3 + $0x38] sm:$0xf]
      %v424 = vld [vmem:[%s3 + $0x3c] sm:$0xf]
      %v425 = vld [vmem:[%s4] sm:$0x1]
      %v427 = vlaneseq
      %v428 = vshrl.u32 %v427, 7
      %v429 = vsub.s32 0, %v428
      %v430 = vrot.slane %v425, %v429
      %v448 = vunpack.c.l.b16 %v409
      %v449 = vunpack.c.l.b16 %v410
      %v450 = vunpack.c.l.b16 %v411
      %v451 = vunpack.c.l.b16 %v412
      %v452 = vunpack.c.l.b16 %v413
      %v453 = vunpack.c.l.b16 %v414
      %v454 = vunpack.c.l.b16 %v415
      %v455 = vunpack.c.l.b16 %v416
      %v456 = vunpack.c.l.b16 %v417
      %v457 = vunpack.c.l.b16 %v418
      %v458 = vunpack.c.l.b16 %v419
      %v459 = vunpack.c.l.b16 %v420
      %v460 = vunpack.c.l.b16 %v421
      %v461 = vunpack.c.l.b16 %v422
      %v462 = vunpack.c.l.b16 %v423
      %v463 = vunpack.c.l.b16 %v424
      %v464 = vpack.c.b16 %v449, %v448
      %v465 = vpack.c.b16 %v451, %v450
      %v466 = vpack.c.b16 %v453, %v452
      %v467 = vpack.c.b16 %v455, %v454
      %v468 = vpack.c.b16 %v457, %v456
      %v469 = vpack.c.b16 %v459, %v458
      %v470 = vpack.c.b16 %v461, %v460
      %v471 = vpack.c.b16 %v463, %v462
      %480 = vmatprep.subr.bf16.mxu0 0
      %481 = vmatpush1.bf16.msra.mxu0 %v471
      %482 = vmatprep.subr.bf16.mxu0 0
      %483 = vmatpush1.bf16.msra.mxu0 %v470
      %484 = vmatprep.subr.bf16.mxu0 0
      %485 = vmatpush1.bf16.msra.mxu0 %v469
      %486 = vmatprep.subr.bf16.mxu0 0
      %487 = vmatpush1.bf16.msra.mxu0 %v468
      %488 = vmatprep.subr.bf16.mxu0 0
      %489 = vmatpush1.bf16.msra.mxu0 %v467
      %490 = vmatprep.subr.bf16.mxu0 0
      %491 = vmatpush1.bf16.msra.mxu0 %v466
      %492 = vmatprep.subr.bf16.mxu0 0
      %493 = vmatpush1.bf16.msra.mxu0 %v465
      %494 = vmatprep.subr.bf16.mxu0 0
      %495 = vmatpush1.bf16.msra.mxu0 %v464
      %496 = vmatprep.subr.bf16.mxu0 0
      %497 = vmatpush2.bf16.msra.mxu0 0
      %498 = vmatprep.subr.bf16.mxu0 0
      %499 = vmatpush2.bf16.msra.mxu0 0
      %500 = vmatprep.subr.bf16.mxu0 0
      %501 = vmatpush2.bf16.msra.mxu0 0
      %502 = vmatprep.subr.bf16.mxu0 0
      %503 = vmatpush2.bf16.msra.mxu0 0
      %504 = vmatprep.subr.bf16.mxu0 0
      %505 = vmatpush2.bf16.msra.mxu0 0
      %506 = vmatprep.subr.bf16.mxu0 0
      %507 = vmatpush2.bf16.msra.mxu0 0
      %508 = vmatprep.subr.bf16.mxu0 0
      %509 = vmatpush2.bf16.msra.mxu0 0
      %510 = vmatprep.subr.bf16.mxu0 0
      %511 = vmatpush2.bf16.msra.mxu0 0
      %512 = vmatprep.mubr.bf16.mxu0 0
      %513 = vmatmul.mubr.bf16.gmra.mxu0 %v405
      %v514 = vpop.f32.mrf.mxu0
      %v515 = vadd.f32 %v430, %v514
      %v516 = vpop.f32.mrf.mxu0
      %v517 = vpop.f32.mrf.mxu0
      %v518 = vadd.f32 %v430, %v517
      %v519 = vpop.f32.mrf.mxu0
      %520 = vmatprep.mubr.bf16.mxu0 0
      %521 = vmatmul.mubr.bf16.gmra.mxu0 %v406
      %v522 = vpop.f32.mrf.mxu0
      %v523 = vadd.f32 %v430, %v522
      %v524 = vpop.f32.mrf.mxu0
      %v525 = vpop.f32.mrf.mxu0
      %v526 = vadd.f32 %v430, %v525
      %v527 = vpop.f32.mrf.mxu0
      %528 = vmatprep.mubr.bf16.mxu0 0
      %529 = vmatmul.mubr.bf16.gmra.mxu0 %v407
      %v530 = vpop.f32.mrf.mxu0
      %v531 = vadd.f32 %v430, %v530
      %v532 = vpop.f32.mrf.mxu0
      %v533 = vpop.f32.mrf.mxu0
      %v534 = vadd.f32 %v430, %v533
      %v535 = vpop.f32.mrf.mxu0
      %536 = vmatprep.mubr.bf16.mxu0 0
      %537 = vmatmul.mubr.bf16.gmra.mxu0 %v408
      %v538 = vpop.f32.mrf.mxu0
      %v539 = vadd.f32 %v430, %v538
      %v540 = vpop.f32.mrf.mxu0
      %v541 = vpop.f32.mrf.mxu0
      %v542 = vadd.f32 %v430, %v541
      %v543 = vpop.f32.mrf.mxu0
      %544 = vdwg.mxu0
      %v545 = vmax.f32 %v515, 0.0
      %v546 = vmax.f32 %v518, 0.0
      %v547 = vmax.f32 %v523, 0.0
      %v548 = vmax.f32 %v526, 0.0
      %v549 = vmax.f32 %v531, 0.0
      %v550 = vmax.f32 %v534, 0.0
      %v551 = vmax.f32 %v539, 0.0
      %v552 = vmax.f32 %v542, 0.0
      %v553 = vld [vmem:[%s5] sm:$0x1]
      %v555 = vlaneseq
      %v556 = vshrl.u32 %v555, 7
      %v557 = vsub.s32 0, %v556
      %v558 = vrot.slane %v553, %v557
      %v560 = vmul.f32 %v545, %v558
      %v561 = vmul.f32 %v546, %v558
      %v562 = vmul.f32 %v547, %v558
      %v563 = vmul.f32 %v548, %v558
      %v564 = vmul.f32 %v549, %v558
      %v565 = vmul.f32 %v550, %v558
      %v566 = vmul.f32 %v551, %v558
      %v567 = vmul.f32 %v552, %v558
      %568 = vadd.xlane.f32.xlu0 %v560
      %v569 = vpop.xlane.xlu0 %568
      %570 = vadd.xlane.f32.xlu0 %v561
      %v571 = vpop.xlane.xlu0 %570
      %572 = vadd.xlane.f32.xlu0 %v562
      %v573 = vpop.xlane.xlu0 %572
      %574 = vadd.xlane.f32.xlu0 %v563
      %v575 = vpop.xlane.xlu0 %574
      %576 = vadd.xlane.f32.xlu0 %v564
      %v577 = vpop.xlane.xlu0 %576
      %578 = vadd.xlane.f32.xlu0 %v565
      %v579 = vpop.xlane.xlu0 %578
      %580 = vadd.xlane.f32.xlu0 %v566
      %v581 = vpop.xlane.xlu0 %580
      %582 = vadd.xlane.f32.xlu0 %v567
      %v583 = vpop.xlane.xlu0 %582
      %v584 = vlaneseq
      %v585 = vand.u32 %v584, 127
      %vm586 = vcmp.lt.s32.totalorder %v585, 64
      %v587 = vsel %vm586, %v560, 0.0
      %v588 = vsel %vm586, %v561, 0.0
      %v589 = vsel %vm586, %v562, 0.0
      %v590 = vsel %vm586, %v563, 0.0
      %v591 = vsel %vm586, %v564, 0.0
      %v592 = vsel %vm586, %v565, 0.0
      %v593 = vsel %vm586, %v566, 0.0
      %v594 = vsel %vm586, %v567, 0.0
      %595 = vadd.xlane.f32.xlu0 %v587
      %v596 = vpop.xlane.xlu0 %595
      %597 = vadd.xlane.f32.xlu0 %v588
      %v598 = vpop.xlane.xlu0 %597
      %599 = vadd.xlane.f32.xlu0 %v589
      %v600 = vpop.xlane.xlu0 %599
      %601 = vadd.xlane.f32.xlu0 %v590
      %v602 = vpop.xlane.xlu0 %601
      %603 = vadd.xlane.f32.xlu0 %v591
      %v604 = vpop.xlane.xlu0 %603
      %605 = vadd.xlane.f32.xlu0 %v592
      %v606 = vpop.xlane.xlu0 %605
      %607 = vadd.xlane.f32.xlu0 %v593
      %v608 = vpop.xlane.xlu0 %607
      %609 = vadd.xlane.f32.xlu0 %v594
      %v610 = vpop.xlane.xlu0 %609
      %s611 = sld [smem:[#allocation2]]
      %v612 = vstv %s611
      %v613 = vadd.f32 %v596, %v612
      %v614 = vadd.f32 %v598, %v612
      %v615 = vadd.f32 %v600, %v612
      %v616 = vadd.f32 %v602, %v612
      %v617 = vadd.f32 %v604, %v612
      %v618 = vadd.f32 %v606, %v612
      %v619 = vadd.f32 %v608, %v612
      %v620 = vadd.f32 %v610, %v612
      %vm621 = vcmask 7168
      %622 = vst.msk [vmem:[%s281] sm:$0xff] %vm621, %v613
      %623 = vst.msk [vmem:[%s281 + $0x8] sm:$0xff] %vm621, %v614
      %624 = vst.msk [vmem:[%s281 + $0x10] sm:$0xff] %vm621, %v615
      %625 = vst.msk [vmem:[%s281 + $0x18] sm:$0xff] %vm621, %v616
      %626 = vst.msk [vmem:[%s281 + $0x20] sm:$0xff] %vm621, %v617
      %627 = vst.msk [vmem:[%s281 + $0x28] sm:$0xff] %vm621, %v618
      %628 = vst.msk [vmem:[%s281 + $0x30] sm:$0xff] %vm621, %v619
      %629 = vst.msk [vmem:[%s281 + $0x38] sm:$0xff] %vm621, %v620
      %v630 = vsub.f32 %v569, %v596
      %v631 = vsub.f32 %v571, %v598
      %v632 = vsub.f32 %v573, %v600
      %v633 = vsub.f32 %v575, %v602
      %v634 = vsub.f32 %v577, %v604
      %v635 = vsub.f32 %v579, %v606
      %v636 = vsub.f32 %v581, %v608
      %v637 = vsub.f32 %v583, %v610
      %v638 = vadd.f32 %v630, %v612
      %v639 = vadd.f32 %v631, %v612
      %v640 = vadd.f32 %v632, %v612
      %v641 = vadd.f32 %v633, %v612
      %v642 = vadd.f32 %v634, %v612
      %v643 = vadd.f32 %v635, %v612
      %v644 = vadd.f32 %v636, %v612
      %v645 = vadd.f32 %v637, %v612
      %vm646 = vcmask 15368
      %647 = vst.msk [vmem:[%s281] sm:$0xff] %vm646, %v638
      %648 = vst.msk [vmem:[%s281 + $0x8] sm:$0xff] %vm646, %v639
      %649 = vst.msk [vmem:[%s281 + $0x10] sm:$0xff] %vm646, %v640
      %650 = vst.msk [vmem:[%s281 + $0x18] sm:$0xff] %vm646, %v641
      %651 = vst.msk [vmem:[%s281 + $0x20] sm:$0xff] %vm646, %v642
      %652 = vst.msk [vmem:[%s281 + $0x28] sm:$0xff] %vm646, %v643
      %653 = vst.msk [vmem:[%s281 + $0x30] sm:$0xff] %vm646, %v644
      %654 = vst.msk [vmem:[%s281 + $0x38] sm:$0xff] %vm646, %v645
      %s655 = smul.u32 8, %s19
      %p656 = scmp.lt.s32.totalorder %s655, 15
      %s657 = scalar_select %p656, %s655, 15
      %s658 = smul.addr %s657, 8
      %s659 = scalar_lea.vmem %s7, %s658
      // Predicated region
      $region49: #{tpu_custom_call.1} parent=47 // pred_check
        %p660 = pneg %p189
      $region50: #{tpu_custom_call.1} parent=47 // pred_check_branch
        %662 = sbr.rel (%p660) target = $region52
      $region51: #{tpu_custom_call.1} parent=47 // pred_region
        %s663 = smul.u32 8, %s19
      $region52: #{tpu_custom_call.1} parent=47 // pred_fallthru
        _
    $region48: #{tpu_custom_call.1} parent=5 // pred_fallthru
      _
    %p664 = scmp.le.s32.totalorder 2, %s14
    // Predicated region
    $region53: #{tpu_custom_call.1} parent=5 // pred_check
      %p665 = pneg %p664
    $region54: #{tpu_custom_call.1} parent=5 // pred_check_branch
      %667 = sbr.rel (%p665) target = $region56
    $region55: #{tpu_custom_call.1} parent=5 // pred_region
      %s668 = ssub.s32 %s14, 2
      // Predicated region
      $region57: #{tpu_custom_call.1} parent=55 // pred_check
        %p669 = pneg %p195
      $region58: #{tpu_custom_call.1} parent=55 // pred_check_branch
        %671 = sbr.rel (%p669) target = $region60
      $region59: #{tpu_custom_call.1} parent=55 // pred_region
        %s672 = smul.u32 8, %s20
        %p673 = scmp.lt.s32.totalorder %s672, 15
        %s674 = scalar_select %p673, %s672, 15
        %s675 = smul.addr %s674, 8
        %s676 = scalar_lea.vmem %s7, %s675
      $region60: #{tpu_custom_call.1} parent=55 // pred_fallthru
        _
    $region56: #{tpu_custom_call.1} parent=5 // pred_fallthru
      _
  $region6: #{tpu_custom_call.1} parent=0 // loop_footer
    %s18 = sadd.s32 1, %s14
  $region7: #{tpu_custom_call.1} parent=0 // loop_footer_branch
    %13 = sbr.rel target = $region3
  $region8: #{tpu_custom_call.1} parent=0 // loop_exit
    _

</llo_original>
